<compile_context>
chip_gen: v7x
topology: tpu7x:2x2x1
jax: 0.10.0
libtpu: 0.0.40
codegen_flags: <defaults>
</compile_context>

<pallas_src>
import jax
import jax.numpy as jnp
from jax import lax
from jax.experimental import pallas as pl
from jax.experimental.pallas import tpu as pltpu

_LANE = 128                     # f32 lane width
_SUBLANE = 8                    # f32 sublane width
_TARGET_BLOCK_BYTES = 4 << 20   # ~4 MiB per stream per block
_MAX_FULL_ROW_F = 4096          # use tf == F (full row) up to this many features


def _round_up(x: int, m: int) -> int:
    return (x + m - 1) // m * m


def _modrelu_kernel(bias_ref, xr_ref, xi_ref, or_ref, oi_ref):
    xr = xr_ref[...]                                   # (tb, tf)
    xi = xi_ref[...]                                   # (tb, tf)
    b = bias_ref[...]                                  # (1, tf) -> broadcasts over rows
    # One EUP op per element instead of sqrt + divide:
    #   relu(mag + b) / mag == relu(1 + b * rsqrt(r^2 + i^2 + eps))
    inv_mag = lax.rsqrt(xr * xr + xi * xi + jnp.float32(1e-9))
    scale = jnp.maximum(jnp.float32(1.0) + b * inv_mag, jnp.float32(0.0))
    or_ref[...] = scale * xr
    oi_ref[...] = scale * xi


def modrelu(input_real: jax.Array, input_imag: jax.Array, bias: jax.Array,
            *, block_batch: int | None = None, block_feat: int | None = None):
    """Pallas TPU implementation of modReLU.

    Args:
      input_real, input_imag: (B, F) float32 arrays.
      bias: (F,) float32 array.
    Returns:
      (out_real, out_imag), each (B, F) float32.
    """
    assert input_real.shape == input_imag.shape
    B, F = input_real.shape
    assert bias.shape == (F,)
    dtype = input_real.dtype
    bias2d = bias.reshape(1, F)

    # ---- feature tile ------------------------------------------------------
    # Prefer tf == F (full contiguous rows, no feature grid axis).  Only tile
    # the feature axis for very wide F, with tf a multiple of 128; the last
    # tile may be a masked edge block (no wrapper pad / slice needed).
    if block_feat is not None:
        tf = min(block_feat, F)
        if tf != F:
            tf = max(_LANE, (tf // _LANE) * _LANE)
    elif F <= _MAX_FULL_ROW_F:
        tf = F
    else:
        tf = 2048

    # ---- batch tile: multiple of 8 (or == B), ~4 MiB per stream ------------
    if block_batch is not None:
        tb = min(block_batch, B)
    else:
        tb = (_TARGET_BLOCK_BYTES // (4 * tf)) // _SUBLANE * _SUBLANE
        tb = max(tb, _SUBLANE)
        tb = min(tb, B)
    if tb != B and tb % _SUBLANE != 0:
        tb = min(B, max(_SUBLANE, (tb // _SUBLANE) * _SUBLANE))

    n_feat_blocks = pl.cdiv(F, tf)
    n_batch_blocks = pl.cdiv(B, tb)

    # v7x has 2 TensorCores: make sure a "parallel" axis has >= 2 blocks when
    # the batch dim is big enough to split cleanly.
    if n_feat_blocks * n_batch_blocks == 1 and B >= 2 * _SUBLANE:
        tb = _round_up(pl.cdiv(B, 2), _SUBLANE)
        n_batch_blocks = pl.cdiv(B, tb)

    out_shape = (
        jax.ShapeDtypeStruct((B, F), dtype),
        jax.ShapeDtypeStruct((B, F), dtype),
    )

    if n_feat_blocks == 1:
        # 1-D grid over batch tiles only; bias block is resident for the whole run.
        grid = (n_batch_blocks,)
        in_specs = [
            pl.BlockSpec((1, tf), lambda i: (0, 0)),     # bias (resident)
            pl.BlockSpec((tb, tf), lambda i: (i, 0)),    # real
            pl.BlockSpec((tb, tf), lambda i: (i, 0)),    # imag
        ]
        out_specs = [
            pl.BlockSpec((tb, tf), lambda i: (i, 0)),
            pl.BlockSpec((tb, tf), lambda i: (i, 0)),
        ]
        dim_sem = ("parallel",)
    else:
        # Feature axis OUTER so the bias block index only changes per outer step.
        grid = (n_feat_blocks, n_batch_blocks)
        in_specs = [
            pl.BlockSpec((1, tf), lambda j, i: (0, j)),  # bias (changes on outer axis only)
            pl.BlockSpec((tb, tf), lambda j, i: (i, j)),
            pl.BlockSpec((tb, tf), lambda j, i: (i, j)),
        ]
        out_specs = [
            pl.BlockSpec((tb, tf), lambda j, i: (i, j)),
            pl.BlockSpec((tb, tf), lambda j, i: (i, j)),
        ]
        dim_sem = ("parallel", "parallel")

    # ---- VMEM budget: 2 buffers x 4 streams x block + bias + slack ----------
    block_bytes = tb * tf * 4
    needed = 2 * 4 * block_bytes + 2 * tf * 4 + (2 << 20)
    try:
        vmem_cap = int(pltpu.get_tpu_info().vmem_capacity_bytes)
    except Exception:
        vmem_cap = 64 << 20          # conservative: valid on every TPU generation
    vmem_limit = max(4 << 20, min(needed, vmem_cap - (8 << 20)))

    cost = pl.CostEstimate(
        flops=9 * B * F,
        transcendentals=B * F,
        bytes_accessed=4 * (4 * B * F + F),
    )

    out_r, out_i = pl.pallas_call(
        _modrelu_kernel,
        out_shape=out_shape,
        grid_spec=pltpu.PrefetchScalarGridSpec(
            num_scalar_prefetch=0,
            grid=grid,
            in_specs=in_specs,
            out_specs=out_specs,
        ),
        compiler_params=pltpu.CompilerParams(
            dimension_semantics=dim_sem,
            vmem_limit_bytes=vmem_limit,
        ),
        cost_estimate=cost,
    )(bias2d, input_real, input_imag)

    return out_r, out_i


def modrelu_reference(input_real, input_imag, bias):
    mag = jnp.sqrt(input_real ** 2 + input_imag ** 2 + 1e-9)
    thr = jax.nn.relu(mag + bias[None, :])
    scale = thr / mag
    return scale * input_real, scale * input_imag


if __name__ == "__main__":
    key = jax.random.PRNGKey(0)

    cases = [
        # (batch, features, block_feat override)
        (8, 32, None),      # F < 128: full-row block equal to the array dim
        (24, 200, None),    # unaligned B and F, batch axis split across 2 blocks
        (16, 300, 128),     # forced feature tiling: outer feature axis + masked edge tile
    ]
    for (batch, num_features, bf) in cases:
        k1, k2, k3, key = jax.random.split(key, 4)
        input_real = jax.random.normal(k1, (batch, num_features), dtype=jnp.float32)
        input_imag = jax.random.normal(k2, (batch, num_features), dtype=jnp.float32)
        # Module inits bias to zeros; use small nonzero values so both branches
        # of the relu are exercised.
        bias = 0.1 * jax.random.normal(k3, (num_features,), dtype=jnp.float32)

        out_r, out_i = modrelu(input_real, input_imag, bias, block_feat=bf)
        jax.block_until_ready((out_r, out_i))

        ref_r, ref_i = modrelu_reference(input_real, input_imag, bias)
        assert jnp.allclose(out_r, ref_r, atol=1e-5, rtol=1e-5)
        assert jnp.allclose(out_i, ref_i, atol=1e-5, rtol=1e-5)

    print("KERNEL_OK")
</pallas_src>

<mosaic_0001>
module attributes {stable_mosaic.version = 11 : i64} {
  func.func @_modrelu_kernel(%arg0: i32, %arg1: memref<1x32xf32, #tpu.memory_space<vmem>>, %arg2: memref<8x32xf32, #tpu.memory_space<vmem>>, %arg3: memref<8x32xf32, #tpu.memory_space<vmem>>, %arg4: memref<8x32xf32, #tpu.memory_space<vmem>>, %arg5: memref<8x32xf32, #tpu.memory_space<vmem>>) attributes {dimension_semantics = [#tpu.dimension_semantics<parallel>], iteration_bounds = array<i64: 1>, scalar_prefetch = 0 : i64, scratch_operands = 0 : i64, tpu.core_type = #tpu.core_type<tc>, window_params = [{pipeline_mode = #tpu.pipeline_mode<synchronous>, transform_indices = @transform_0, window_bounds = array<i64: 1, 32>}, {transform_indices = @transform_1, window_bounds = array<i64: 8, 32>}, {transform_indices = @transform_2, window_bounds = array<i64: 8, 32>}, {transform_indices = @transform_3, window_bounds = array<i64: 8, 32>}, {transform_indices = @transform_4, window_bounds = array<i64: 8, 32>}]} {
    %c0 = arith.constant 0 : index
    %c0_0 = arith.constant 0 : index
    %0 = vector.load %arg2[%c0, %c0_0] : memref<8x32xf32, #tpu.memory_space<vmem>>, vector<8x32xf32>
    %c0_1 = arith.constant 0 : index
    %c0_2 = arith.constant 0 : index
    %1 = vector.load %arg3[%c0_1, %c0_2] : memref<8x32xf32, #tpu.memory_space<vmem>>, vector<8x32xf32>
    %c0_3 = arith.constant 0 : index
    %c0_4 = arith.constant 0 : index
    %2 = vector.load %arg1[%c0_3, %c0_4] : memref<1x32xf32, #tpu.memory_space<vmem>>, vector<1x32xf32>
    %3 = arith.mulf %0, %0 : vector<8x32xf32>
    %4 = arith.mulf %1, %1 : vector<8x32xf32>
    %5 = arith.addf %3, %4 : vector<8x32xf32>
    %cst = arith.constant 9.99999971E-10 : f32
    %6 = vector.broadcast %cst : f32 to vector<8x32xf32>
    %7 = arith.addf %5, %6 : vector<8x32xf32>
    %8 = math.rsqrt %7 : vector<8x32xf32>
    %9 = vector.broadcast %2 : vector<1x32xf32> to vector<8x32xf32>
    %10 = arith.mulf %9, %8 : vector<8x32xf32>
    %cst_5 = arith.constant 1.000000e+00 : f32
    %11 = vector.broadcast %cst_5 : f32 to vector<8x32xf32>
    %12 = arith.addf %11, %10 : vector<8x32xf32>
    %cst_6 = arith.constant 0.000000e+00 : f32
    %13 = vector.broadcast %cst_6 : f32 to vector<8x32xf32>
    %14 = arith.maximumf %12, %13 : vector<8x32xf32>
    %15 = arith.mulf %14, %0 : vector<8x32xf32>
    %c0_7 = arith.constant 0 : index
    %c0_8 = arith.constant 0 : index
    %16 = vector.load %arg4[%c0_7, %c0_8] : memref<8x32xf32, #tpu.memory_space<vmem>>, vector<8x32xf32>
    tpu.vector_store %arg4[%c0_7, %c0_8], %15 {strides = array<i32>} : memref<8x32xf32, #tpu.memory_space<vmem>>, vector<8x32xf32>,
    %17 = arith.mulf %14, %1 : vector<8x32xf32>
    %c0_9 = arith.constant 0 : index
    %c0_10 = arith.constant 0 : index
    %18 = vector.load %arg5[%c0_9, %c0_10] : memref<8x32xf32, #tpu.memory_space<vmem>>, vector<8x32xf32>
    tpu.vector_store %arg5[%c0_9, %c0_10], %17 {strides = array<i32>} : memref<8x32xf32, #tpu.memory_space<vmem>>, vector<8x32xf32>,
    return
  }
  func.func @transform_0(%arg0: i32) -> (i32, i32) {
    %c0_i32 = arith.constant 0 : i32
    %c0_i32_0 = arith.constant 0 : i32
    %c0_i32_1 = arith.constant 0 : i32
    return %c0_i32, %c0_i32_0 : i32, i32
  }
  func.func @transform_1(%arg0: i32) -> (i32, i32) {
    %c0_i32 = arith.constant 0 : i32
    %c0_i32_0 = arith.constant 0 : i32
    return %arg0, %c0_i32 : i32, i32
  }
  func.func @transform_2(%arg0: i32) -> (i32, i32) {
    %c0_i32 = arith.constant 0 : i32
    %c0_i32_0 = arith.constant 0 : i32
    return %arg0, %c0_i32 : i32, i32
  }
  func.func @transform_3(%arg0: i32) -> (i32, i32) {
    %c0_i32 = arith.constant 0 : i32
    %c0_i32_0 = arith.constant 0 : i32
    return %arg0, %c0_i32 : i32, i32
  }
  func.func @transform_4(%arg0: i32) -> (i32, i32) {
    %c0_i32 = arith.constant 0 : i32
    %c0_i32_0 = arith.constant 0 : i32
    return %arg0, %c0_i32 : i32, i32
  }
}

</mosaic_0001>

<llo_original>
// kernel: tpu_custom_call.1
$region0: #{tpu_custom_call.1}
  #allocation0 [shape = 'u32[]', space=smem, size = 0x4, offset = 0x4, fixed_abs, tag = 'smem constant byte address 0x4 - core index']
  #allocation1 [shape = 'u32[144,128]{1,0:T(1,128)}', space=vmem, size = 0x12000, scoped, tag = 'internal scratch']
  %s0 = inlined_call_operand.hbm [shape: f32[1,32], index: 0, kind: input, shape index: {}]
  %s1 = inlined_call_operand.hbm [shape: f32[8,32], index: 1, kind: input, shape index: {}]
  %s2 = inlined_call_operand.hbm [shape: f32[8,32], index: 2, kind: input, shape index: {}]
  %s3 = inlined_call_operand.hbm [shape: f32[8,32], index: 3, kind: output, shape index: {0}]
  %s4 = inlined_call_operand.hbm [shape: f32[8,32], index: 4, kind: output, shape index: {1}]
  %5 = xla_tuple %s3, %s4
  %s6 = sld [smem:[#allocation0]]
  $region42: #{tpu_custom_call.1} parent=0
    _
  %s8 = ssub.s32 1, %s6
  %s9 = scalar_select 0, %s8, %s6
  $region1: #{tpu_custom_call.1} parent=0
    #allocation2 [shape = 'u8[512]{0}', space=vmem, size = 0x400, scoped, tag = 'input window, operand 0, single buffered']
    #allocation3 [shape = 's32[1]{0}', space=sflag, size = 0x4, scoped, tag = 'scoped memory for tpu_custom_call.1']
    #allocation4 [shape = 's32[1]{0}', space=sflag, size = 0x4, scoped, tag = 'scoped memory for tpu_custom_call.1']
    #allocation5 [shape = 'u8[4096]{0}', space=vmem, size = 0x1000, scoped, tag = 'input window, operand 1, single buffered']
    #allocation6 [shape = 's32[1]{0}', space=sflag, size = 0x4, scoped, tag = 'scoped memory for tpu_custom_call.1']
    #allocation7 [shape = 'u8[4096]{0}', space=vmem, size = 0x1000, scoped, tag = 'input window, operand 2, single buffered']
    #allocation8 [shape = 'u8[4096]{0}', space=vmem, size = 0x1000, scoped, tag = 'output window, operand 0, single buffered']
    #allocation9 [shape = 'u8[4096]{0}', space=vmem, size = 0x1000, scoped, tag = 'output window, operand 1, single buffered']
    #allocation10 [shape = 's32[1]{0}', space=sflag, size = 0x4, scoped, tag = 'scoped memory for tpu_custom_call.1']
    %10 = vsyncpa [#allocation3], 0
    %11 = vsyncpa [#allocation6], 0
    %12 = vsyncpa [#allocation4], 0
    %13 = vsyncpa [#allocation10], 0
    // Predicated region
    $region2: #{tpu_custom_call.1} parent=1 // pred_check
      _
    $region3: #{tpu_custom_call.1} parent=1 // pred_check_branch
      %15 = sbr.rel (0) target = $region5
    $region4: #{tpu_custom_call.1} parent=1 // pred_region
      %s17 = ssub.s32 16, 16
      %18 = vsyncadd [#allocation3], %s17
      %s20 = sshll.u32 [#allocation2], 4
      %s21 = int_to_ptr.vmem [resolvable:$true] %s20
      %23 = dma.hbm_to_vmem [thread:$0]  %s0, 16, %s21, [#allocation3]
    $region5: #{tpu_custom_call.1} parent=1 // pred_fallthru
      _
    // Predicated region
    $region6: #{tpu_custom_call.1} parent=1 // pred_check
      _
    $region7: #{tpu_custom_call.1} parent=1 // pred_check_branch
      %25 = sbr.rel (0) target = $region9
    $region8: #{tpu_custom_call.1} parent=1 // pred_region
      %s27 = ssub.s32 128, 128
      %28 = vsyncadd [#allocation6], %s27
      %s30 = sshll.u32 [#allocation5], 4
      %s31 = int_to_ptr.vmem [resolvable:$true] %s30
      %33 = dma.hbm_to_vmem [thread:$0]  %s1, 128, %s31, [#allocation6]
    $region9: #{tpu_custom_call.1} parent=1 // pred_fallthru
      _
    // Predicated region
    $region10: #{tpu_custom_call.1} parent=1 // pred_check
      _
    $region11: #{tpu_custom_call.1} parent=1 // pred_check_branch
      %35 = sbr.rel (0) target = $region13
    $region12: #{tpu_custom_call.1} parent=1 // pred_region
      %s37 = ssub.s32 128, 128
      %38 = vsyncadd [#allocation6], %s37
      %s40 = sshll.u32 [#allocation7], 4
      %s41 = int_to_ptr.vmem [resolvable:$true] %s40
      %43 = dma.hbm_to_vmem [thread:$0]  %s2, 128, %s41, [#allocation6]
    $region13: #{tpu_custom_call.1} parent=1 // pred_fallthru
      _
    // Predicated region
    $region14: #{tpu_custom_call.1} parent=1 // pred_check
      _
    $region15: #{tpu_custom_call.1} parent=1 // pred_check_branch
      %45 = sbr.rel (0) target = $region17
    $region16: #{tpu_custom_call.1} parent=1 // pred_region
      %46 = dma.done [#allocation3], 16
    $region17: #{tpu_custom_call.1} parent=1 // pred_fallthru
      _
    // Predicated region
    $region18: #{tpu_custom_call.1} parent=1 // pred_check
      _
    $region19: #{tpu_custom_call.1} parent=1 // pred_check_branch
      %48 = sbr.rel (0) target = $region21
    $region20: #{tpu_custom_call.1} parent=1 // pred_region
      %49 = dma.done [#allocation6], 128
    $region21: #{tpu_custom_call.1} parent=1 // pred_fallthru
      _
    // Predicated region
    $region22: #{tpu_custom_call.1} parent=1 // pred_check
      _
    $region23: #{tpu_custom_call.1} parent=1 // pred_check_branch
      %51 = sbr.rel (0) target = $region25
    $region24: #{tpu_custom_call.1} parent=1 // pred_region
      %52 = dma.done [#allocation6], 128
    $region25: #{tpu_custom_call.1} parent=1 // pred_fallthru
      _
    %v53 = vld [vmem:[#allocation5] sm:$0xff]
    %v54 = vld [vmem:[#allocation7] sm:$0xff]
    %v55 = vld [vmem:[#allocation2] sm:$0x1]
    %v56 = vmul.f32 %v53, %v53
    %v57 = vmul.f32 %v54, %v54
    %v58 = vadd.f32 %v56, %v57
    %v59 = vadd.f32 %v58, 1e-09
    %v60 = vrsqrt.pop %v59
    %v62 = vlaneseq
    %v63 = vshrl.u32 %v62, 7
    %v64 = vsub.s32 0, %v63
    %v65 = vrot.slane %v55, %v64
    %v67 = vmul.f32 %v65, %v60
    %v68 = vadd.f32 %v67, 1.0
    %v69 = vmax.f32 %v68, 0.0
    %v70 = vmul.f32 %v69, %v53
    %vm71 = vcmask 261120
    %72 = vst.msk [vmem:[#allocation8] sm:$0xff] %vm71, %v70
    %v73 = vmul.f32 %v69, %v54
    %74 = vst.msk [vmem:[#allocation9] sm:$0xff] %vm71, %v73
    // Predicated region
    $region26: #{tpu_custom_call.1} parent=1 // pred_check
      _
    $region27: #{tpu_custom_call.1} parent=1 // pred_check_branch
      %76 = sbr.rel (0) target = $region29
    $region28: #{tpu_custom_call.1} parent=1 // pred_region
      %s78 = ssub.s32 128, 128
      %79 = vsyncadd [#allocation4], %s78
      %s81 = sshll.u32 [#allocation8], 4
      %s82 = int_to_ptr.vmem [resolvable:$true] %s81
      %84 = dma.vmem_to_hbm [thread:$0]  %s82, 128, %s3, [#allocation4]
    $region29: #{tpu_custom_call.1} parent=1 // pred_fallthru
      _
    // Predicated region
    $region30: #{tpu_custom_call.1} parent=1 // pred_check
      _
    $region31: #{tpu_custom_call.1} parent=1 // pred_check_branch
      %86 = sbr.rel (0) target = $region33
    $region32: #{tpu_custom_call.1} parent=1 // pred_region
      %s88 = ssub.s32 128, 128
      %89 = vsyncadd [#allocation10], %s88
      %s91 = sshll.u32 [#allocation9], 4
      %s92 = int_to_ptr.vmem [resolvable:$true] %s91
      %94 = dma.vmem_to_hbm [thread:$0]  %s92, 128, %s4, [#allocation10]
    $region33: #{tpu_custom_call.1} parent=1 // pred_fallthru
      _
    // Predicated region
    $region34: #{tpu_custom_call.1} parent=1 // pred_check
      _
    $region35: #{tpu_custom_call.1} parent=1 // pred_check_branch
      %96 = sbr.rel (0) target = $region37
    $region36: #{tpu_custom_call.1} parent=1 // pred_region
      %97 = dma.done [#allocation4], 128
    $region37: #{tpu_custom_call.1} parent=1 // pred_fallthru
      _
    // Predicated region
    $region38: #{tpu_custom_call.1} parent=1 // pred_check
      _
    $region39: #{tpu_custom_call.1} parent=1 // pred_check_branch
      %99 = sbr.rel (0) target = $region41
    $region40: #{tpu_custom_call.1} parent=1 // pred_region
      %100 = dma.done [#allocation10], 128
    $region41: #{tpu_custom_call.1} parent=1 // pred_fallthru
      _
    %101 = vsyncpa [#allocation3], 1
    %102 = vsyncpa [#allocation6], 1
    %103 = vsyncpa [#allocation4], 1
    %104 = vsyncpa [#allocation10], 1

</llo_original>
